<compile_context>
chip_gen: v7x
topology: tpu7x:2x2x1
jax: 0.10.0
libtpu: 0.0.40
codegen_flags: <defaults>
</compile_context>

<pallas_src>
import jax
import jax.numpy as jnp
from jax.experimental import pallas as pl
from jax.experimental.pallas import tpu as pltpu


_TM_CAP = 4096        # batch-tile cap (rows): ~1.25 MiB in+out per buffer at these dims
_SMALL_BATCH = 64     # below this, pallas_call dispatch overhead dominates -> plain XLA


def _decoder_kernel(x_ref, w1_ref, b1_ref, w2_ref, b2_ref, o_ref):
    # x_ref:  (TM, L)   batch tile of inputs
    # w1_ref: (L, H)    linear1 weight (pre-transposed), resident in VMEM
    # b1_ref: (1, H)    linear1 bias
    # w2_ref: (H, O)    linear2 weight (pre-transposed), resident in VMEM
    # b2_ref: (1, O)    linear2 bias
    # o_ref:  (TM, O)   output tile
    x = x_ref[...]
    h = jnp.dot(x, w1_ref[...], preferred_element_type=jnp.float32) + b1_ref[...]
    h = jnp.maximum(h, 0.0)                                       # ReLU
    y = jnp.dot(h.astype(w2_ref.dtype), w2_ref[...],
                preferred_element_type=jnp.float32) + b2_ref[...]
    o_ref[...] = jax.nn.sigmoid(y).astype(o_ref.dtype)            # sigmoid


def _round_up(v, m):
    return ((v + m - 1) // m) * m


def _num_tensorcores_per_chip():
    """Best-effort detection of TensorCores per chip (v7x/v4/v5p -> 2, else 1)."""
    try:
        kind = (getattr(jax.devices()[0], "device_kind", "") or "").lower()
        if "v7" in kind or "v4" in kind or "v5p" in kind:
            return 2
    except Exception:
        pass
    return 1


def _auto_tile(batch, num_cores):
    if num_cores > 1:
        # Give each TensorCore at least one tile (v7x), capped at _TM_CAP.
        per_core = _round_up(pl.cdiv(batch, num_cores), 8)
        return max(8, min(_TM_CAP, per_core))
    # Single-TC chips (v5e / v6e): one big tile up to the cap.
    return max(8, min(_TM_CAP, _round_up(batch, 8)))


def _xla_forward(x, w1, b1_2d, w2, b2_2d):
    h = jnp.maximum(x @ w1 + b1_2d, 0.0)
    return jax.nn.sigmoid(h @ w2 + b2_2d)


def decoder_forward(x, w1, b1, w2, b2, *, tm=None, force_pallas=False):
    """x: (B, latent). w1: (latent, hidden), b1: (1, hidden) [or (hidden,)],
    w2: (hidden, output), b2: (1, output) [or (output,)].  Returns (B, output)."""
    B, L = x.shape
    H = w1.shape[1]
    O = w2.shape[1]
    dtype = x.dtype
    itemsize = jnp.dtype(dtype).itemsize

    # Biases are ideally pre-shaped (1, H)/(1, O) at parameter setup; this reshape
    # is only a fallback so no per-call layout ops surround the kernel.
    b1_2d = b1 if b1.ndim == 2 else b1.reshape(1, H)
    b2_2d = b2 if b2.ndim == 2 else b2.reshape(1, O)

    # Tiny batches: pallas_call dispatch + pipeline setup dominate -> plain XLA.
    if not force_pallas and B < _SMALL_BATCH:
        return _xla_forward(x, w1, b1_2d, w2, b2_2d)

    if tm is None:
        tm = _auto_tile(B, _num_tensorcores_per_chip())
    if tm >= B:
        tm = B                       # one full-batch tile (block == array dim is always legal)
    else:
        tm = max(8, _round_up(tm, 8))

    grid = (pl.cdiv(B, tm),)         # partial last block handled by Pallas (no pad/slice)

    cost = pl.CostEstimate(
        flops=2 * B * (L * H + H * O),
        transcendentals=2 * B * O,   # sigmoid = exp + reciprocal
        bytes_accessed=itemsize * (B * (L + O) + L * H + H * O + H + O),
    )

    return pl.pallas_call(
        _decoder_kernel,
        out_shape=jax.ShapeDtypeStruct((B, O), dtype),
        grid_spec=pl.GridSpec(
            grid=grid,
            in_specs=[
                pl.BlockSpec((tm, L), lambda i: (i, 0)),   # x batch tile
                pl.BlockSpec((L, H), lambda i: (0, 0)),    # W1 (resident)
                pl.BlockSpec((1, H), lambda i: (0, 0)),    # b1
                pl.BlockSpec((H, O), lambda i: (0, 0)),    # W2 (resident)
                pl.BlockSpec((1, O), lambda i: (0, 0)),    # b2
            ],
            out_specs=pl.BlockSpec((tm, O), lambda i: (i, 0)),
        ),
        compiler_params=pltpu.CompilerParams(
            dimension_semantics=("parallel",),
        ),
        cost_estimate=cost,
    )(x, w1, b1_2d, w2, b2_2d)


if __name__ == "__main__":
    # Shapes consistent with the module's forward:
    # batch=8, latent=16, hidden=32, output=64 (cfg.DTYPE assumed float32)
    B, LATENT, HIDDEN, OUTPUT = 8, 16, 32, 64
    dtype = jnp.float32

    key = jax.random.PRNGKey(0)
    kx, k1, k2, k3, k4 = jax.random.split(key, 5)

    x = jax.random.normal(kx, (B, LATENT), dtype=dtype)

    # Parameters kept pre-transposed (in, out) and biases pre-shaped (1, out),
    # so the per-call path emits no pad/reshape/transpose around the kernel.
    w1 = jax.random.normal(k1, (LATENT, HIDDEN), dtype=dtype) * (1.0 / jnp.sqrt(LATENT))
    b1 = (jax.random.normal(k2, (HIDDEN,), dtype=dtype) * 0.01).reshape(1, HIDDEN)
    w2 = jax.random.normal(k3, (HIDDEN, OUTPUT), dtype=dtype) * (1.0 / jnp.sqrt(HIDDEN))
    b2 = (jax.random.normal(k4, (OUTPUT,), dtype=dtype) * 0.01).reshape(1, OUTPUT)

    def ref(xv):
        h = jnp.maximum(xv @ w1 + b1, 0.0)
        return jax.nn.sigmoid(h @ w2 + b2)

    # 1) Small batch, forced through the Pallas kernel (single full-batch tile).
    y = jax.block_until_ready(decoder_forward(x, w1, b1, w2, b2, force_pallas=True))
    assert y.shape == (B, OUTPUT)
    assert jnp.allclose(y, ref(x), atol=1e-5, rtol=1e-5), "mismatch vs reference (forced)"

    # 2) Small batch, auto path (XLA bypass below the batch threshold).
    y_auto = jax.block_until_ready(decoder_forward(x, w1, b1, w2, b2))
    assert jnp.allclose(y_auto, ref(x), atol=1e-5, rtol=1e-5), "mismatch vs reference (auto)"

    # 3) Non-tile-divisible batch: partial last block, no wrapper pad/slice copies.
    x2 = jax.random.normal(jax.random.PRNGKey(1), (100, LATENT), dtype=dtype)
    y2 = jax.block_until_ready(decoder_forward(x2, w1, b1, w2, b2))
    assert y2.shape == (100, OUTPUT)
    assert jnp.allclose(y2, ref(x2), atol=1e-5, rtol=1e-5), "mismatch vs reference (B=100)"

    # 4) Larger batch: exercises the raised tile cap and a multi-step grid.
    x3 = jax.random.normal(jax.random.PRNGKey(2), (5000, LATENT), dtype=dtype)
    y3 = jax.block_until_ready(decoder_forward(x3, w1, b1, w2, b2))
    assert y3.shape == (5000, OUTPUT)
    assert jnp.allclose(y3, ref(x3), atol=1e-5, rtol=1e-5), "mismatch vs reference (B=5000)"

    print("KERNEL_OK")
</pallas_src>

<mosaic_0001>
module attributes {stable_mosaic.version = 11 : i64} {
  func.func @_decoder_kernel(%arg0: i32, %arg1: memref<8x16xf32, #tpu.memory_space<vmem>>, %arg2: memref<16x32xf32, #tpu.memory_space<vmem>>, %arg3: memref<1x32xf32, #tpu.memory_space<vmem>>, %arg4: memref<32x64xf32, #tpu.memory_space<vmem>>, %arg5: memref<1x64xf32, #tpu.memory_space<vmem>>, %arg6: memref<8x64xf32, #tpu.memory_space<vmem>>) attributes {dimension_semantics = [#tpu.dimension_semantics<parallel>], iteration_bounds = array<i64: 1>, scalar_prefetch = 0 : i64, scratch_operands = 0 : i64, tpu.core_type = #tpu.core_type<tc>, window_params = [{transform_indices = @transform_0, window_bounds = array<i64: 8, 16>}, {pipeline_mode = #tpu.pipeline_mode<synchronous>, transform_indices = @transform_1, window_bounds = array<i64: 16, 32>}, {pipeline_mode = #tpu.pipeline_mode<synchronous>, transform_indices = @transform_2, window_bounds = array<i64: 1, 32>}, {pipeline_mode = #tpu.pipeline_mode<synchronous>, transform_indices = @transform_3, window_bounds = array<i64: 32, 64>}, {pipeline_mode = #tpu.pipeline_mode<synchronous>, transform_indices = @transform_4, window_bounds = array<i64: 1, 64>}, {transform_indices = @transform_5, window_bounds = array<i64: 8, 64>}]} {
    %c0 = arith.constant 0 : index
    %c0_0 = arith.constant 0 : index
    %0 = vector.load %arg1[%c0, %c0_0] : memref<8x16xf32, #tpu.memory_space<vmem>>, vector<8x16xf32>
    %c0_1 = arith.constant 0 : index
    %c0_2 = arith.constant 0 : index
    %1 = vector.load %arg2[%c0_1, %c0_2] : memref<16x32xf32, #tpu.memory_space<vmem>>, vector<16x32xf32>
    %cst = arith.constant dense<0.000000e+00> : vector<8x32xf32>
    %2 = tpu.matmul %0, %1, %cst {dimension_numbers = #tpu.dot_dimension_numbers<[1], [0], [0], [1], [0, 0, 1, 1], [], []>} : vector<8x16xf32>, vector<16x32xf32>, vector<8x32xf32> -> vector<8x32xf32>
    %c0_3 = arith.constant 0 : index
    %c0_4 = arith.constant 0 : index
    %3 = vector.load %arg3[%c0_3, %c0_4] : memref<1x32xf32, #tpu.memory_space<vmem>>, vector<1x32xf32>
    %4 = vector.broadcast %3 : vector<1x32xf32> to vector<8x32xf32>
    %5 = arith.addf %2, %4 : vector<8x32xf32>
    %cst_5 = arith.constant 0.000000e+00 : f32
    %6 = vector.broadcast %cst_5 : f32 to vector<8x32xf32>
    %7 = arith.maximumf %5, %6 : vector<8x32xf32>
    %c0_6 = arith.constant 0 : index
    %c0_7 = arith.constant 0 : index
    %8 = vector.load %arg4[%c0_6, %c0_7] : memref<32x64xf32, #tpu.memory_space<vmem>>, vector<32x64xf32>
    %cst_8 = arith.constant dense<0.000000e+00> : vector<8x64xf32>
    %9 = tpu.matmul %7, %8, %cst_8 {dimension_numbers = #tpu.dot_dimension_numbers<[1], [0], [0], [1], [0, 0, 1, 1], [], []>} : vector<8x32xf32>, vector<32x64xf32>, vector<8x64xf32> -> vector<8x64xf32>
    %c0_9 = arith.constant 0 : index
    %c0_10 = arith.constant 0 : index
    %10 = vector.load %arg5[%c0_9, %c0_10] : memref<1x64xf32, #tpu.memory_space<vmem>>, vector<1x64xf32>
    %11 = vector.broadcast %10 : vector<1x64xf32> to vector<8x64xf32>
    %12 = arith.addf %9, %11 : vector<8x64xf32>
    %13 = arith.negf %12 : vector<8x64xf32>
    %14 = math.exp %13 : vector<8x64xf32>
    %cst_11 = arith.constant 1.000000e+00 : f32
    %15 = vector.broadcast %cst_11 : f32 to vector<8x64xf32>
    %16 = arith.addf %15, %14 : vector<8x64xf32>
    %17 = arith.divf %15, %16 : vector<8x64xf32>
    %c0_12 = arith.constant 0 : index
    %c0_13 = arith.constant 0 : index
    %18 = vector.load %arg6[%c0_12, %c0_13] : memref<8x64xf32, #tpu.memory_space<vmem>>, vector<8x64xf32>
    tpu.vector_store %arg6[%c0_12, %c0_13], %17 {strides = array<i32>} : memref<8x64xf32, #tpu.memory_space<vmem>>, vector<8x64xf32>,
    return
  }
  func.func @transform_0(%arg0: i32) -> (i32, i32) {
    %c0_i32 = arith.constant 0 : i32
    %c0_i32_0 = arith.constant 0 : i32
    return %arg0, %c0_i32 : i32, i32
  }
  func.func @transform_1(%arg0: i32) -> (i32, i32) {
    %c0_i32 = arith.constant 0 : i32
    %c0_i32_0 = arith.constant 0 : i32
    %c0_i32_1 = arith.constant 0 : i32
    return %c0_i32, %c0_i32_0 : i32, i32
  }
  func.func @transform_2(%arg0: i32) -> (i32, i32) {
    %c0_i32 = arith.constant 0 : i32
    %c0_i32_0 = arith.constant 0 : i32
    %c0_i32_1 = arith.constant 0 : i32
    return %c0_i32, %c0_i32_0 : i32, i32
  }
  func.func @transform_3(%arg0: i32) -> (i32, i32) {
    %c0_i32 = arith.constant 0 : i32
    %c0_i32_0 = arith.constant 0 : i32
    %c0_i32_1 = arith.constant 0 : i32
    return %c0_i32, %c0_i32_0 : i32, i32
  }
  func.func @transform_4(%arg0: i32) -> (i32, i32) {
    %c0_i32 = arith.constant 0 : i32
    %c0_i32_0 = arith.constant 0 : i32
    %c0_i32_1 = arith.constant 0 : i32
    return %c0_i32, %c0_i32_0 : i32, i32
  }
  func.func @transform_5(%arg0: i32) -> (i32, i32) {
    %c0_i32 = arith.constant 0 : i32
    %c0_i32_0 = arith.constant 0 : i32
    return %arg0, %c0_i32 : i32, i32
  }
}

</mosaic_0001>

<llo_original>
// kernel: tpu_custom_call.1
$region0: #{tpu_custom_call.1}
  #allocation0 [shape = 'u32[]', space=smem, size = 0x4, offset = 0x4, fixed_abs, tag = 'smem constant byte address 0x4 - core index']
  #allocation1 [shape = 'u32[144,128]{1,0:T(1,128)}', space=vmem, size = 0x12000, scoped, tag = 'internal scratch']
  %s0 = inlined_call_operand.hbm [shape: f32[8,16], index: 0, kind: input, shape index: {}]
  %s1 = inlined_call_operand.hbm [shape: f32[16,32], index: 1, kind: input, shape index: {}]
  %s2 = inlined_call_operand.vmem [shape: f32[1,32], index: 2, kind: input, shape index: {}]
  %s3 = inlined_call_operand.hbm [shape: f32[32,64], index: 3, kind: input, shape index: {}]
  %s4 = inlined_call_operand.vmem [shape: f32[1,64], index: 4, kind: input, shape index: {}]
  %s5 = inlined_call_operand.hbm [shape: f32[8,64], index: 5, kind: output, shape index: {}]
  %s6 = sld [smem:[#allocation0]]
  $region42: #{tpu_custom_call.1} parent=0
    _
  %s8 = ssub.s32 1, %s6
  %s9 = scalar_select 0, %s8, %s6
  $region1: #{tpu_custom_call.1} parent=0
    #allocation2 [shape = 'u8[4096]{0}', space=vmem, size = 0x1000, scoped, tag = 'input window, operand 0, single buffered']
    #allocation3 [shape = 's32[1]{0}', space=sflag, size = 0x4, scoped, tag = 'scoped memory for tpu_custom_call.1']
    #allocation4 [shape = 's32[1]{0}', space=sflag, size = 0x4, scoped, tag = 'scoped memory for tpu_custom_call.1']
    #allocation5 [shape = 'u8[8192]{0}', space=vmem, size = 0x2000, scoped, tag = 'input window, operand 1, single buffered']
    #allocation6 [shape = 's32[1]{0}', space=sflag, size = 0x4, scoped, tag = 'scoped memory for tpu_custom_call.1']
    #allocation7 [shape = 'u8[16384]{0}', space=vmem, size = 0x4000, scoped, tag = 'input window, operand 3, single buffered']
    #allocation8 [shape = 'u8[4096]{0}', space=vmem, size = 0x1000, scoped, tag = 'output window, operand 0, single buffered']
    %10 = vsyncpa [#allocation3], 0
    %11 = vsyncpa [#allocation6], 0
    %12 = vsyncpa [#allocation4], 0
    // Predicated region
    $region2: #{tpu_custom_call.1} parent=1 // pred_check
      _
    $region3: #{tpu_custom_call.1} parent=1 // pred_check_branch
      %14 = sbr.rel (0) target = $region5
    $region4: #{tpu_custom_call.1} parent=1 // pred_region
      %s16 = ssub.s32 128, 128
      %17 = vsyncadd [#allocation3], %s16
      %s19 = sshll.u32 [#allocation2], 4
      %s20 = int_to_ptr.vmem [resolvable:$true] %s19
      %22 = dma.hbm_to_vmem [thread:$0]  %s0, 128, %s20, [#allocation3]
    $region5: #{tpu_custom_call.1} parent=1 // pred_fallthru
      _
    // Predicated region
    $region6: #{tpu_custom_call.1} parent=1 // pred_check
      _
    $region7: #{tpu_custom_call.1} parent=1 // pred_check_branch
      %24 = sbr.rel (0) target = $region9
    $region8: #{tpu_custom_call.1} parent=1 // pred_region
      %s26 = ssub.s32 256, 256
      %27 = vsyncadd [#allocation6], %s26
      %s28 = sshll.u32 [#allocation5], 4
      %s29 = int_to_ptr.vmem [resolvable:$true] %s28
      %34 = dma.hbm_to_vmem [thread:$0]  %s1, 256, %s29, [#allocation6], 128, 128, 8
    $region9: #{tpu_custom_call.1} parent=1 // pred_fallthru
      _
    // Predicated region
    $region10: #{tpu_custom_call.1} parent=1 // pred_check
      _
    $region11: #{tpu_custom_call.1} parent=1 // pred_check_branch
      %36 = sbr.rel (0) target = $region13
    $region12: #{tpu_custom_call.1} parent=1 // pred_region
      _
    $region13: #{tpu_custom_call.1} parent=1 // pred_fallthru
      _
    // Predicated region
    $region14: #{tpu_custom_call.1} parent=1 // pred_check
      _
    $region15: #{tpu_custom_call.1} parent=1 // pred_check_branch
      %38 = sbr.rel (0) target = $region17
    $region16: #{tpu_custom_call.1} parent=1 // pred_region
      %s40 = ssub.s32 512, 512
      %41 = vsyncadd [#allocation6], %s40
      %s42 = sshll.u32 [#allocation7], 4
      %s43 = int_to_ptr.vmem [resolvable:$true] %s42
      %48 = dma.hbm_to_vmem [thread:$0]  %s3, 512, %s43, [#allocation6], 128, 128, 8
    $region17: #{tpu_custom_call.1} parent=1 // pred_fallthru
      _
    // Predicated region
    $region18: #{tpu_custom_call.1} parent=1 // pred_check
      _
    $region19: #{tpu_custom_call.1} parent=1 // pred_check_branch
      %50 = sbr.rel (0) target = $region21
    $region20: #{tpu_custom_call.1} parent=1 // pred_region
      _
    $region21: #{tpu_custom_call.1} parent=1 // pred_fallthru
      _
    // Predicated region
    $region22: #{tpu_custom_call.1} parent=1 // pred_check
      _
    $region23: #{tpu_custom_call.1} parent=1 // pred_check_branch
      %52 = sbr.rel (0) target = $region25
    $region24: #{tpu_custom_call.1} parent=1 // pred_region
      %53 = dma.done [#allocation3], 128
    $region25: #{tpu_custom_call.1} parent=1 // pred_fallthru
      _
    // Predicated region
    $region26: #{tpu_custom_call.1} parent=1 // pred_check
      _
    $region27: #{tpu_custom_call.1} parent=1 // pred_check_branch
      %55 = sbr.rel (0) target = $region29
    $region28: #{tpu_custom_call.1} parent=1 // pred_region
      %56 = dma.done [#allocation6], 256
    $region29: #{tpu_custom_call.1} parent=1 // pred_fallthru
      _
    // Predicated region
    $region30: #{tpu_custom_call.1} parent=1 // pred_check
      _
    $region31: #{tpu_custom_call.1} parent=1 // pred_check_branch
      %58 = sbr.rel (0) target = $region33
    $region32: #{tpu_custom_call.1} parent=1 // pred_region
      %59 = dma.done [#allocation6], 512
    $region33: #{tpu_custom_call.1} parent=1 // pred_fallthru
      _
    %v60 = vld [vmem:[#allocation2] sm:$0xff]
    %v61 = vld [vmem:[#allocation5] sm:$0xff]
    %v62 = vld [vmem:[#allocation5 + $0x8] sm:$0xff]
    %v63 = vld [vmem:[%s2] sm:$0x1]
    %v65 = vlaneseq
    %v66 = vshrl.u32 %v65, 7
    %v67 = vsub.s32 0, %v66
    %v68 = vrot.slane %v63, %v67
    %vm70 = vcmask 130048
    %v72 = vsel %vm70, %v60, 0
    %74 = vmatprep.subr.mxu0 0.0
    %75 = vmatpush1.msra.mxu0 %v61
    %76 = vmatprep.subr.mxu0 0.0
    %77 = vmatpush1.msra.mxu0 %v62
    %78 = vmatprep.subr.mxu0 0.0
    %79 = vmatpush1.msra.mxu0 0.0
    %80 = vmatprep.subr.mxu0 0.0
    %81 = vmatpush1.msra.mxu0 0.0
    %82 = vmatprep.subr.mxu0 0.0
    %83 = vmatpush1.msra.mxu0 0.0
    %84 = vmatprep.subr.mxu0 0.0
    %85 = vmatpush1.msra.mxu0 0.0
    %86 = vmatprep.subr.mxu0 0.0
    %87 = vmatpush1.msra.mxu0 0.0
    %88 = vmatprep.subr.mxu0 0.0
    %89 = vmatpush1.msra.mxu0 0.0
    %90 = vmatprep.subr.mxu0 0.0
    %91 = vmatpush1.msra.mxu0 0.0
    %92 = vmatprep.subr.mxu0 0.0
    %93 = vmatpush1.msra.mxu0 0.0
    %94 = vmatprep.subr.mxu0 0.0
    %95 = vmatpush1.msra.mxu0 0.0
    %96 = vmatprep.subr.mxu0 0.0
    %97 = vmatpush1.msra.mxu0 0.0
    %98 = vmatprep.subr.mxu0 0.0
    %99 = vmatpush1.msra.mxu0 0.0
    %100 = vmatprep.subr.mxu0 0.0
    %101 = vmatpush1.msra.mxu0 0.0
    %102 = vmatprep.subr.mxu0 0.0
    %103 = vmatpush1.msra.mxu0 0.0
    %104 = vmatprep.subr.mxu0 0.0
    %105 = vmatpush1.msra.mxu0 0.0
    %106 = vmatprep.subr.mxu0 0.0
    %107 = vmatpush1.msra.mxu0 0.0
    %108 = vmatprep.subr.mxu0 0.0
    %109 = vmatpush1.msra.mxu0 0.0
    %110 = vmatprep.subr.mxu0 0.0
    %111 = vmatpush1.msra.mxu0 0.0
    %112 = vmatprep.subr.mxu0 0.0
    %113 = vmatpush1.msra.mxu0 0.0
    %114 = vmatprep.subr.mxu0 0.0
    %115 = vmatpush1.msra.mxu0 0.0
    %116 = vmatprep.subr.mxu0 0.0
    %117 = vmatpush1.msra.mxu0 0.0
    %118 = vmatprep.subr.mxu0 0.0
    %119 = vmatpush1.msra.mxu0 0.0
    %120 = vmatprep.subr.mxu0 0.0
    %121 = vmatpush1.msra.mxu0 0.0
    %122 = vmatprep.subr.mxu0 0.0
    %123 = vmatpush1.msra.mxu0 0.0
    %124 = vmatprep.subr.mxu0 0.0
    %125 = vmatpush1.msra.mxu0 0.0
    %126 = vmatprep.subr.mxu0 0.0
    %127 = vmatpush1.msra.mxu0 0.0
    %128 = vmatprep.subr.mxu0 0.0
    %129 = vmatpush1.msra.mxu0 0.0
    %130 = vmatprep.subr.mxu0 0.0
    %131 = vmatpush1.msra.mxu0 0.0
    %132 = vmatprep.subr.mxu0 0.0
    %133 = vmatpush1.msra.mxu0 0.0
    %134 = vmatprep.subr.mxu0 0.0
    %135 = vmatpush1.msra.mxu0 0.0
    %136 = vmatprep.subr.mxu0 0.0
    %137 = vmatpush1.msra.mxu0 0.0
    %138 = vmatprep.mubr.f32.mxu0 0.0
    %139 = vmatmul.mubr.f32.gmra.mrb[0].mxu0 %v72
    %v140 = vpop.f32.mrb[0].mxu0
    %v141 = vadd.f32 %v68, %v140
    %v142 = vpop.f32.mrb[0].mxu0
    %143 = vdwg.mxu0
    %v144 = vmax.f32 %v141, 0.0
    %v145 = vld [vmem:[#allocation7] sm:$0xff]
    %v146 = vld [vmem:[#allocation7 + $0x8] sm:$0xff]
    %v147 = vld [vmem:[#allocation7 + $0x10] sm:$0xff]
    %v148 = vld [vmem:[#allocation7 + $0x18] sm:$0xff]
    %v149 = vld [vmem:[%s4] sm:$0x1]
    %v151 = vlaneseq
    %v152 = vshrl.u32 %v151, 7
    %v153 = vsub.s32 0, %v152
    %v154 = vrot.slane %v149, %v153
    %vm156 = vcmask 261120
    %v158 = vsel %vm156, %v144, 0
    %160 = vmatprep.subr.mxu0 0.0
    %161 = vmatpush1.msra.mxu0 %v145
    %162 = vmatprep.subr.mxu0 0.0
    %163 = vmatpush1.msra.mxu0 %v146
    %164 = vmatprep.subr.mxu0 0.0
    %165 = vmatpush1.msra.mxu0 %v147
    %166 = vmatprep.subr.mxu0 0.0
    %167 = vmatpush1.msra.mxu0 %v148
    %168 = vmatprep.subr.mxu0 0.0
    %169 = vmatpush1.msra.mxu0 0.0
    %170 = vmatprep.subr.mxu0 0.0
    %171 = vmatpush1.msra.mxu0 0.0
    %172 = vmatprep.subr.mxu0 0.0
    %173 = vmatpush1.msra.mxu0 0.0
    %174 = vmatprep.subr.mxu0 0.0
    %175 = vmatpush1.msra.mxu0 0.0
    %176 = vmatprep.subr.mxu0 0.0
    %177 = vmatpush1.msra.mxu0 0.0
    %178 = vmatprep.subr.mxu0 0.0
    %179 = vmatpush1.msra.mxu0 0.0
    %180 = vmatprep.subr.mxu0 0.0
    %181 = vmatpush1.msra.mxu0 0.0
    %182 = vmatprep.subr.mxu0 0.0
    %183 = vmatpush1.msra.mxu0 0.0
    %184 = vmatprep.subr.mxu0 0.0
    %185 = vmatpush1.msra.mxu0 0.0
    %186 = vmatprep.subr.mxu0 0.0
    %187 = vmatpush1.msra.mxu0 0.0
    %188 = vmatprep.subr.mxu0 0.0
    %189 = vmatpush1.msra.mxu0 0.0
    %190 = vmatprep.subr.mxu0 0.0
    %191 = vmatpush1.msra.mxu0 0.0
    %192 = vmatprep.subr.mxu0 0.0
    %193 = vmatpush1.msra.mxu0 0.0
    %194 = vmatprep.subr.mxu0 0.0
    %195 = vmatpush1.msra.mxu0 0.0
    %196 = vmatprep.subr.mxu0 0.0
    %197 = vmatpush1.msra.mxu0 0.0
    %198 = vmatprep.subr.mxu0 0.0
    %199 = vmatpush1.msra.mxu0 0.0
    %200 = vmatprep.subr.mxu0 0.0
    %201 = vmatpush1.msra.mxu0 0.0
    %202 = vmatprep.subr.mxu0 0.0
    %203 = vmatpush1.msra.mxu0 0.0
    %204 = vmatprep.subr.mxu0 0.0
    %205 = vmatpush1.msra.mxu0 0.0
    %206 = vmatprep.subr.mxu0 0.0
    %207 = vmatpush1.msra.mxu0 0.0
    %208 = vmatprep.subr.mxu0 0.0
    %209 = vmatpush1.msra.mxu0 0.0
    %210 = vmatprep.subr.mxu0 0.0
    %211 = vmatpush1.msra.mxu0 0.0
    %212 = vmatprep.subr.mxu0 0.0
    %213 = vmatpush1.msra.mxu0 0.0
    %214 = vmatprep.subr.mxu0 0.0
    %215 = vmatpush1.msra.mxu0 0.0
    %216 = vmatprep.subr.mxu0 0.0
    %217 = vmatpush1.msra.mxu0 0.0
    %218 = vmatprep.subr.mxu0 0.0
    %219 = vmatpush1.msra.mxu0 0.0
    %220 = vmatprep.subr.mxu0 0.0
    %221 = vmatpush1.msra.mxu0 0.0
    %222 = vmatprep.subr.mxu0 0.0
    %223 = vmatpush1.msra.mxu0 0.0
    %224 = vmatprep.mubr.f32.mxu0 0.0
    %225 = vmatmul.mubr.f32.gmra.mrb[0].mxu0 %v158
    %v226 = vpop.f32.mrb[0].mxu0
    %v227 = vadd.f32 %v154, %v226
    %v228 = vpop.f32.mrb[0].mxu0
    %229 = vdwg.mxu0
    %v230 = vxor.u32 %v227, 2147483648
    %v231 = vmul.f32 %v230, 1.442695
    %v232 = vpow.pop %v231
    %v233 = vadd.f32 %v232, 1.0
    %v234 = vrcp.pop %v233
    %v235 = vmul.f32 1.0, %v234
    %vm236 = vcmask 523264
    %237 = vst.msk [vmem:[#allocation8] sm:$0xff] %vm236, %v235
    // Predicated region
    $region34: #{tpu_custom_call.1} parent=1 // pred_check
      _
    $region35: #{tpu_custom_call.1} parent=1 // pred_check_branch
      %239 = sbr.rel (0) target = $region37
    $region36: #{tpu_custom_call.1} parent=1 // pred_region
      %s241 = ssub.s32 128, 128
      %242 = vsyncadd [#allocation4], %s241
      %s244 = sshll.u32 [#allocation8], 4
      %s245 = int_to_ptr.vmem [resolvable:$true] %s244
      %247 = dma.vmem_to_hbm [thread:$0]  %s245, 128, %s5, [#allocation4]
    $region37: #{tpu_custom_call.1} parent=1 // pred_fallthru
      _
    // Predicated region
    $region38: #{tpu_custom_call.1} parent=1 // pred_check
      _
    $region39: #{tpu_custom_call.1} parent=1 // pred_check_branch
      %249 = sbr.rel (0) target = $region41
    $region40: #{tpu_custom_call.1} parent=1 // pred_region
      %250 = dma.done [#allocation4], 128
    $region41: #{tpu_custom_call.1} parent=1 // pred_fallthru
      _
    %251 = vsyncpa [#allocation3], 1
    %252 = vsyncpa [#allocation6], 1
    %253 = vsyncpa [#allocation4], 1

</llo_original>
